<compile_context>
chip_gen: v7x
topology: tpu7x:2x2x1
jax: 0.10.0
libtpu: 0.0.40
codegen_flags: <defaults>
</compile_context>

<pallas_src>
import functools

import jax
import jax.numpy as jnp
from jax.experimental import pallas as pl
from jax.experimental.pallas import tpu as pltpu


def _round_up(x, m):
    return ((x + m - 1) // m) * m


@functools.lru_cache(maxsize=1)
def _vmem_budget_bytes():
    """Usable scoped-VMEM budget for this chip (physical minus headroom)."""
    cap = None
    try:
        cap = int(getattr(pltpu.get_tpu_info(), "vmem_capacity_bytes"))
    except Exception:
        cap = None
    if cap is None:
        try:
            kind = jax.devices()[0].device_kind.lower()
            if "v7" in kind or "7x" in kind:
                cap = 64 * 1024 * 1024
            elif "v5" in kind or "v6" in kind:
                cap = 128 * 1024 * 1024
        except Exception:
            cap = None
    if cap is None:
        cap = 64 * 1024 * 1024  # conservative fallback
    headroom = max(8 * 1024 * 1024, cap // 8)  # compiler scratch + margin
    return int(min(cap - headroom, 100 * 1024 * 1024))


def _resident_footprint(tm, in_pad, h_pad, out_pad, cbytes, obytes):
    """VMEM bytes when both (padded) weight matrices stay resident."""
    return (2 * tm * in_pad * cbytes        # x tile (double-buffered)
            + 2 * in_pad * h_pad * cbytes   # W1 full (conservatively 2 buffers)
            + 2 * h_pad * 4                 # b1 (f32)
            + 2 * h_pad * out_pad * cbytes  # W2 full
            + 2 * out_pad * 4               # b2
            + 2 * tm * out_pad * obytes     # output tile
            + tm * h_pad * (4 + cbytes)     # f32 h + bf16 copy for 2nd matmul
            + 2 * 1024 * 1024)              # misc compiler scratch allowance


def _tiled_footprint(tm, tk, in_pad, h_pad, out_pad, cbytes):
    """VMEM bytes for the k-tiled (h_dim) path; output is the f32 accumulator."""
    return (2 * tm * in_pad * cbytes        # x tile
            + 2 * in_pad * tk * cbytes      # W1 k-slice
            + 2 * h_pad * 4                 # b1 (resident, f32)
            + 2 * tk * out_pad * cbytes     # W2 k-slice
            + 2 * out_pad * 4               # b2
            + 2 * tm * out_pad * 4          # f32 output tile (accumulator)
            + tm * tk * (4 + cbytes)        # f32 h + bf16 copy
            + 2 * 1024 * 1024)


def _select_tiling(M, in_pad, h_pad, out_pad, cbytes, obytes, budget, force_tiled):
    """Pick (tm, tk, tiled) from the VMEM budget. tiled=False -> weights resident."""
    m_pad128 = _round_up(M, 128)
    # Keep >= 2 token tiles when possible so the "parallel" axis can feed both
    # TensorCores on v7x (single-TC chips are unaffected).
    tm_cap = m_pad128 if m_pad128 < 256 else m_pad128 // 2
    tm_cands = [t for t in (1024, 512, 256, 128) if t <= tm_cap]

    if not force_tiled:
        for tm in tm_cands:
            if _resident_footprint(tm, in_pad, h_pad, out_pad, cbytes, obytes) <= budget:
                return tm, h_pad, False

    tk_cands = [t for t in (512, 256, 128) if t <= h_pad and h_pad % t == 0]
    for tm in tm_cands:                # prefer the largest token tile first:
        for tk in tk_cands:            # weight re-streaming scales as 1/tm
            if _tiled_footprint(tm, tk, in_pad, h_pad, out_pad, cbytes) <= budget:
                return tm, tk, True
    return tm_cands[-1], tk_cands[-1], True  # last resort: smallest tiles


def _mlp_kernel_resident(x_ref, w1_ref, b1_ref, w2_ref, b2_ref, o_ref):
    """Grid = (m_tiles,). Both weights resident in VMEM (loaded once)."""
    h = jnp.dot(x_ref[...], w1_ref[...], preferred_element_type=jnp.float32)
    h = jnp.maximum(h + b1_ref[...], 0.0)                 # bias + ReLU on the VPU
    out = jnp.dot(h.astype(w2_ref.dtype), w2_ref[...],
                  preferred_element_type=jnp.float32)
    o_ref[...] = (out + b2_ref[...]).astype(o_ref.dtype)


def _mlp_kernel_tiled(x_ref, w1_ref, b1_ref, w2_ref, b2_ref, o_ref, *, tk):
    """Grid = (m_tiles, k_tiles); k tiles h_dim (fc1 N axis == fc2 K axis).

    The f32 output tile is resident across k (constant output block index), so
    we accumulate straight into o_ref — no separate scratch accumulator.
    """
    k = pl.program_id(1)

    @pl.when(k == 0)
    def _init():
        o_ref[...] = jnp.zeros_like(o_ref)

    # fc1 slice: (tm, in_pad) @ (in_pad, tk) on the MXU, f32 accumulate.
    h = jnp.dot(x_ref[...], w1_ref[...], preferred_element_type=jnp.float32)
    start = pl.multiple_of(k * tk, 128)
    h = jnp.maximum(h + b1_ref[:, pl.ds(start, tk)], 0.0)

    # fc2 partial sum: (tm, tk) @ (tk, out_pad) accumulated across k.
    o_ref[...] += jnp.dot(h.astype(w2_ref.dtype), w2_ref[...],
                          preferred_element_type=jnp.float32)

    @pl.when(k == pl.num_programs(1) - 1)
    def _finalize():
        o_ref[...] = o_ref[...] + b2_ref[...]


def prepare_params(w1, b1, w2, b2, compute_dtype=jnp.bfloat16):
    """Pad (to lane multiples of 128) and cast the weights ONCE.

    w1: [in_dim, h_dim], w2: [h_dim, out_d]  (already transposed vs. PyTorch's
    [out, in] layout).  Biases stay f32 so the adds happen in f32.
    """
    in_dim, h_dim = w1.shape
    out_d = w2.shape[1]
    in_pad = _round_up(in_dim, 128)
    h_pad = _round_up(h_dim, 128)
    out_pad = _round_up(out_d, 128)
    # Zero padding is exact: padded h columns give ReLU(0)=0 and padded W2 rows
    # are zero, so they contribute nothing; padded out columns are sliced off.
    w1_p = jnp.pad(w1, ((0, in_pad - in_dim), (0, h_pad - h_dim))).astype(compute_dtype)
    w2_p = jnp.pad(w2, ((0, h_pad - h_dim), (0, out_pad - out_d))).astype(compute_dtype)
    b1_p = jnp.pad(b1.astype(jnp.float32), (0, h_pad - h_dim)).reshape(1, h_pad)
    b2_p = jnp.pad(b2.astype(jnp.float32), (0, out_pad - out_d)).reshape(1, out_pad)
    return w1_p, b1_p, w2_p, b2_p


@functools.partial(jax.jit, static_argnames=("out_d", "force_tiled"))
def mlp_transformer(x, w1_p, b1_p, w2_p, b2_p, *, out_d, force_tiled=False):
    """x: [B, S, in_dim]; padded params from prepare_params(). Returns [B, S, out_d]."""
    orig_dtype = x.dtype
    B, S, in_dim = x.shape
    M = B * S
    in_pad, h_pad = w1_p.shape
    out_pad = w2_p.shape[1]
    cdtype = w1_p.dtype
    cbytes = jnp.dtype(cdtype).itemsize
    obytes = max(jnp.dtype(orig_dtype).itemsize, 2)

    budget = _vmem_budget_bytes()
    tm, tk, tiled = _select_tiling(M, in_pad, h_pad, out_pad, cbytes, obytes,
                                   budget, force_tiled)

    # Pad activations per call (weights were padded once, outside this path).
    m_pad = _round_up(M, tm)
    x2d = x.reshape(M, in_dim).astype(cdtype)
    x_p = jnp.pad(x2d, ((0, m_pad - M), (0, in_pad - in_dim)))

    m_tiles = m_pad // tm
    weight_reads = 1 if not tiled else m_tiles   # actual re-streaming factor
    cost = pl.CostEstimate(
        flops=2 * m_pad * in_pad * h_pad + 2 * m_pad * h_pad * out_pad,
        transcendentals=0,
        bytes_accessed=int(
            x_p.size * cbytes
            + (w1_p.size + w2_p.size) * cbytes * weight_reads
            + (b1_p.size + b2_p.size) * 4
            + m_pad * out_pad * (4 if tiled else jnp.dtype(orig_dtype).itemsize)),
    )

    if not tiled:
        grid = (m_tiles,)
        in_specs = [
            pl.BlockSpec((tm, in_pad), lambda i: (i, 0)),        # x tile
            pl.BlockSpec((in_pad, h_pad), lambda i: (0, 0)),     # W1 (resident)
            pl.BlockSpec((1, h_pad), lambda i: (0, 0)),          # b1
            pl.BlockSpec((h_pad, out_pad), lambda i: (0, 0)),    # W2 (resident)
            pl.BlockSpec((1, out_pad), lambda i: (0, 0)),        # b2
        ]
        out_spec = pl.BlockSpec((tm, out_pad), lambda i: (i, 0))
        out_dtype = orig_dtype
        kernel = _mlp_kernel_resident
        dims = ("parallel",)
    else:
        k_tiles = h_pad // tk
        grid = (m_tiles, k_tiles)
        in_specs = [
            pl.BlockSpec((tm, in_pad), lambda i, k: (i, 0)),     # x tile
            pl.BlockSpec((in_pad, tk), lambda i, k: (0, k)),     # W1 k-slice
            pl.BlockSpec((1, h_pad), lambda i, k: (0, 0)),       # b1 (resident)
            pl.BlockSpec((tk, out_pad), lambda i, k: (k, 0)),    # W2 k-slice
            pl.BlockSpec((1, out_pad), lambda i, k: (0, 0)),     # b2
        ]
        out_spec = pl.BlockSpec((tm, out_pad), lambda i, k: (i, 0))
        out_dtype = jnp.float32     # accumulate directly in the resident output tile
        kernel = functools.partial(_mlp_kernel_tiled, tk=tk)
        dims = ("parallel", "arbitrary")

    out_p = pl.pallas_call(
        kernel,
        out_shape=jax.ShapeDtypeStruct((m_pad, out_pad), out_dtype),
        grid_spec=pltpu.PrefetchScalarGridSpec(
            num_scalar_prefetch=0,
            grid=grid,
            in_specs=in_specs,
            out_specs=out_spec,
        ),
        compiler_params=pltpu.CompilerParams(
            dimension_semantics=dims,
            vmem_limit_bytes=int(budget),
        ),
        cost_estimate=cost,
    )(x_p, w1_p, b1_p, w2_p, b2_p)

    # Padded M rows hold ReLU(b1) @ W2 + b2 garbage; they are dropped here.
    return out_p[:M, :out_d].reshape(B, S, out_d).astype(orig_dtype)


def init_params(key, in_dim, h_dim, out_d, dtype=jnp.float32):
    """Deterministic synthetic init (shapes match nn.Linear(in,h)/nn.Linear(h,out))."""
    k1, k2, k3, k4 = jax.random.split(key, 4)
    # Stored transposed relative to PyTorch's [out, in] convention.
    w1 = (jax.random.normal(k1, (in_dim, h_dim), dtype) / jnp.sqrt(in_dim)).astype(dtype)
    b1 = (jax.random.normal(k2, (h_dim,), dtype) * 0.01).astype(dtype)
    w2 = (jax.random.normal(k3, (h_dim, out_d), dtype) / jnp.sqrt(h_dim)).astype(dtype)
    b2 = (jax.random.normal(k4, (out_d,), dtype) * 0.01).astype(dtype)
    return w1, b1, w2, b2


def _reference(x, w1, b1, w2, b2):
    """Pure-JAX reference mirroring the kernel's bf16-operand / f32-accum math."""
    x2 = x.reshape(-1, x.shape[-1]).astype(jnp.bfloat16)
    h = jnp.dot(x2, w1.astype(jnp.bfloat16), preferred_element_type=jnp.float32)
    h = jnp.maximum(h + b1.astype(jnp.float32), 0.0)
    o = jnp.dot(h.astype(jnp.bfloat16), w2.astype(jnp.bfloat16),
                preferred_element_type=jnp.float32) + b2.astype(jnp.float32)
    return o.reshape(x.shape[:-1] + (w2.shape[1],))


if __name__ == "__main__":
    key = jax.random.PRNGKey(0)
    kx, kp = jax.random.split(key)

    # Small shapes consistent with the module's forward: tokens x feature dims.
    B, S = 2, 8          # batch=2, seq=8 -> M = 16 tokens
    in_dim, h_dim = 32, 64
    out_d = in_dim       # out_d defaults to in_dim in the module

    x = jax.random.normal(kx, (B, S, in_dim), jnp.float32)
    w1, b1, w2, b2 = init_params(kp, in_dim, h_dim, out_d)
    params = prepare_params(w1, b1, w2, b2)          # pad + cast to bf16, once

    # Path 1: resident-weight fast path (weights tiny -> no k grid axis).
    out = mlp_transformer(x, *params, out_d=out_d)
    out = jax.block_until_ready(out)
    assert out.shape == (B, S, out_d)
    ref = _reference(x, w1, b1, w2, b2)
    assert jnp.allclose(out.astype(jnp.float32), ref, atol=1e-2, rtol=1e-2), \
        f"max diff {float(jnp.max(jnp.abs(out.astype(jnp.float32) - ref)))}"

    # Path 2: force the k-tiled accumulator path (h_dim padded to 1024 -> 2 k tiles).
    in2, h2, o2 = 64, 1024, 64
    x2 = jax.random.normal(jax.random.PRNGKey(1), (2, 16, in2), jnp.float32)
    w1b, b1b, w2b, b2b = init_params(jax.random.PRNGKey(2), in2, h2, o2)
    params2 = prepare_params(w1b, b1b, w2b, b2b)
    out2 = mlp_transformer(x2, *params2, out_d=o2, force_tiled=True)
    out2 = jax.block_until_ready(out2)
    ref2 = _reference(x2, w1b, b1b, w2b, b2b)
    assert out2.shape == (2, 16, o2)
    assert jnp.allclose(out2.astype(jnp.float32), ref2, atol=1e-2, rtol=1e-2), \
        f"max diff {float(jnp.max(jnp.abs(out2.astype(jnp.float32) - ref2)))}"

    print("KERNEL_OK")
</pallas_src>

<mosaic_0001>
module attributes {stable_mosaic.version = 11 : i64} {
  func.func @_mlp_kernel_resident(%arg0: i32, %arg1: memref<128x128xbf16, #tpu.memory_space<vmem>>, %arg2: memref<128x128xbf16, #tpu.memory_space<vmem>>, %arg3: memref<1x128xf32, #tpu.memory_space<vmem>>, %arg4: memref<128x128xbf16, #tpu.memory_space<vmem>>, %arg5: memref<1x128xf32, #tpu.memory_space<vmem>>, %arg6: memref<128x128xf32, #tpu.memory_space<vmem>>) attributes {dimension_semantics = [#tpu.dimension_semantics<parallel>], iteration_bounds = array<i64: 1>, scalar_prefetch = 0 : i64, scratch_operands = 0 : i64, tpu.core_type = #tpu.core_type<tc>, window_params = [{transform_indices = @transform_0, window_bounds = array<i64: 128, 128>}, {pipeline_mode = #tpu.pipeline_mode<synchronous>, transform_indices = @transform_1, window_bounds = array<i64: 128, 128>}, {pipeline_mode = #tpu.pipeline_mode<synchronous>, transform_indices = @transform_2, window_bounds = array<i64: 1, 128>}, {pipeline_mode = #tpu.pipeline_mode<synchronous>, transform_indices = @transform_3, window_bounds = array<i64: 128, 128>}, {pipeline_mode = #tpu.pipeline_mode<synchronous>, transform_indices = @transform_4, window_bounds = array<i64: 1, 128>}, {transform_indices = @transform_5, window_bounds = array<i64: 128, 128>}]} {
    %c0 = arith.constant 0 : index
    %c0_0 = arith.constant 0 : index
    %0 = vector.load %arg1[%c0, %c0_0] : memref<128x128xbf16, #tpu.memory_space<vmem>>, vector<128x128xbf16>
    %c0_1 = arith.constant 0 : index
    %c0_2 = arith.constant 0 : index
    %1 = vector.load %arg2[%c0_1, %c0_2] : memref<128x128xbf16, #tpu.memory_space<vmem>>, vector<128x128xbf16>
    %cst = arith.constant dense<0.000000e+00> : vector<128x128xf32>
    %2 = tpu.matmul %0, %1, %cst {dimension_numbers = #tpu.dot_dimension_numbers<[1], [0], [0], [1], [0, 0, 1, 1], [], []>} : vector<128x128xbf16>, vector<128x128xbf16>, vector<128x128xf32> -> vector<128x128xf32>
    %c0_3 = arith.constant 0 : index
    %c0_4 = arith.constant 0 : index
    %3 = vector.load %arg3[%c0_3, %c0_4] : memref<1x128xf32, #tpu.memory_space<vmem>>, vector<1x128xf32>
    %4 = vector.broadcast %3 : vector<1x128xf32> to vector<128x128xf32>
    %5 = arith.addf %2, %4 : vector<128x128xf32>
    %cst_5 = arith.constant 0.000000e+00 : f32
    %6 = vector.broadcast %cst_5 : f32 to vector<128x128xf32>
    %7 = arith.maximumf %5, %6 : vector<128x128xf32>
    %8 = arith.truncf %7 : vector<128x128xf32> to vector<128x128xbf16>
    %c0_6 = arith.constant 0 : index
    %c0_7 = arith.constant 0 : index
    %9 = vector.load %arg4[%c0_6, %c0_7] : memref<128x128xbf16, #tpu.memory_space<vmem>>, vector<128x128xbf16>
    %cst_8 = arith.constant dense<0.000000e+00> : vector<128x128xf32>
    %10 = tpu.matmul %8, %9, %cst_8 {dimension_numbers = #tpu.dot_dimension_numbers<[1], [0], [0], [1], [0, 0, 1, 1], [], []>} : vector<128x128xbf16>, vector<128x128xbf16>, vector<128x128xf32> -> vector<128x128xf32>
    %c0_9 = arith.constant 0 : index
    %c0_10 = arith.constant 0 : index
    %11 = vector.load %arg5[%c0_9, %c0_10] : memref<1x128xf32, #tpu.memory_space<vmem>>, vector<1x128xf32>
    %12 = vector.broadcast %11 : vector<1x128xf32> to vector<128x128xf32>
    %13 = arith.addf %10, %12 : vector<128x128xf32>
    %c0_11 = arith.constant 0 : index
    %c0_12 = arith.constant 0 : index
    %14 = vector.load %arg6[%c0_11, %c0_12] : memref<128x128xf32, #tpu.memory_space<vmem>>, vector<128x128xf32>
    tpu.vector_store %arg6[%c0_11, %c0_12], %13 {strides = array<i32>} : memref<128x128xf32, #tpu.memory_space<vmem>>, vector<128x128xf32>,
    return
  }
  func.func @transform_0(%arg0: i32) -> (i32, i32) {
    %c0_i32 = arith.constant 0 : i32
    %c0_i32_0 = arith.constant 0 : i32
    return %arg0, %c0_i32 : i32, i32
  }
  func.func @transform_1(%arg0: i32) -> (i32, i32) {
    %c0_i32 = arith.constant 0 : i32
    %c0_i32_0 = arith.constant 0 : i32
    %c0_i32_1 = arith.constant 0 : i32
    return %c0_i32, %c0_i32_0 : i32, i32
  }
  func.func @transform_2(%arg0: i32) -> (i32, i32) {
    %c0_i32 = arith.constant 0 : i32
    %c0_i32_0 = arith.constant 0 : i32
    %c0_i32_1 = arith.constant 0 : i32
    return %c0_i32, %c0_i32_0 : i32, i32
  }
  func.func @transform_3(%arg0: i32) -> (i32, i32) {
    %c0_i32 = arith.constant 0 : i32
    %c0_i32_0 = arith.constant 0 : i32
    %c0_i32_1 = arith.constant 0 : i32
    return %c0_i32, %c0_i32_0 : i32, i32
  }
  func.func @transform_4(%arg0: i32) -> (i32, i32) {
    %c0_i32 = arith.constant 0 : i32
    %c0_i32_0 = arith.constant 0 : i32
    %c0_i32_1 = arith.constant 0 : i32
    return %c0_i32, %c0_i32_0 : i32, i32
  }
  func.func @transform_5(%arg0: i32) -> (i32, i32) {
    %c0_i32 = arith.constant 0 : i32
    %c0_i32_0 = arith.constant 0 : i32
    return %arg0, %c0_i32 : i32, i32
  }
}

</mosaic_0001>

<llo_original>
// kernel: mlp_transformer.1
$region0: #{mlp_transformer.1}
  #allocation0 [shape = 'u32[]', space=smem, size = 0x4, offset = 0x4, fixed_abs, tag = 'smem constant byte address 0x4 - core index']
  #allocation1 [shape = 'u32[144,128]{1,0:T(1,128)}', space=vmem, size = 0x12000, scoped, tag = 'internal scratch']
  %s0 = inlined_call_operand.vmem [shape: bf16[128,128], index: 0, kind: input, shape index: {}]
  %s1 = inlined_call_operand.vmem [shape: bf16[128,128], index: 1, kind: input, shape index: {}]
  %s2 = inlined_call_operand.vmem [shape: f32[1,128], index: 2, kind: input, shape index: {}]
  %s3 = inlined_call_operand.hbm [shape: bf16[128,128], index: 3, kind: input, shape index: {}]
  %s4 = inlined_call_operand.vmem [shape: f32[1,128], index: 4, kind: input, shape index: {}]
  %s5 = inlined_call_operand.vmem [shape: f32[128,128], index: 5, kind: output, shape index: {}]
  %s6 = sld [smem:[#allocation0]]
  $region34: #{mlp_transformer.1} parent=0
    _
  %s8 = ssub.s32 1, %s6
  %s9 = scalar_select 0, %s8, %s6
  $region1: #{mlp_transformer.1} parent=0
    #allocation2 [shape = 'u8[32768]{0}', space=vmem, size = 0x8000, scoped, tag = 'input window, operand 3, single buffered']
    #allocation3 [shape = 's32[1]{0}', space=sflag, size = 0x4, scoped, tag = 'scoped memory for mlp_transformer.1']
    %10 = vsyncpa [#allocation3], 0
    // Predicated region
    $region2: #{mlp_transformer.1} parent=1 // pred_check
      _
    $region3: #{mlp_transformer.1} parent=1 // pred_check_branch
      %12 = sbr.rel (0) target = $region5
    $region4: #{mlp_transformer.1} parent=1 // pred_region
      _
    $region5: #{mlp_transformer.1} parent=1 // pred_fallthru
      _
    // Predicated region
    $region6: #{mlp_transformer.1} parent=1 // pred_check
      _
    $region7: #{mlp_transformer.1} parent=1 // pred_check_branch
      %14 = sbr.rel (0) target = $region9
    $region8: #{mlp_transformer.1} parent=1 // pred_region
      _
    $region9: #{mlp_transformer.1} parent=1 // pred_fallthru
      _
    // Predicated region
    $region10: #{mlp_transformer.1} parent=1 // pred_check
      _
    $region11: #{mlp_transformer.1} parent=1 // pred_check_branch
      %16 = sbr.rel (0) target = $region13
    $region12: #{mlp_transformer.1} parent=1 // pred_region
      _
    $region13: #{mlp_transformer.1} parent=1 // pred_fallthru
      _
    // Predicated region
    $region14: #{mlp_transformer.1} parent=1 // pred_check
      _
    $region15: #{mlp_transformer.1} parent=1 // pred_check_branch
      %18 = sbr.rel (0) target = $region17
    $region16: #{mlp_transformer.1} parent=1 // pred_region
      %s20 = ssub.s32 1024, 1024
      %21 = vsyncadd [#allocation3], %s20
      %s22 = sshll.u32 [#allocation2], 4
      %s23 = int_to_ptr.vmem [resolvable:$true] %s22
      %28 = dma.hbm_to_vmem [thread:$0]  %s3, 1024, %s23, [#allocation3], 64, 64, 4
    $region17: #{mlp_transformer.1} parent=1 // pred_fallthru
      _
    // Predicated region
    $region18: #{mlp_transformer.1} parent=1 // pred_check
      _
    $region19: #{mlp_transformer.1} parent=1 // pred_check_branch
      %30 = sbr.rel (0) target = $region21
    $region20: #{mlp_transformer.1} parent=1 // pred_region
      _
    $region21: #{mlp_transformer.1} parent=1 // pred_fallthru
      _
    // Predicated region
    $region22: #{mlp_transformer.1} parent=1 // pred_check
      _
    $region23: #{mlp_transformer.1} parent=1 // pred_check_branch
      %32 = sbr.rel (0) target = $region25
    $region24: #{mlp_transformer.1} parent=1 // pred_region
      %33 = dma.done [#allocation3], 1024
    $region25: #{mlp_transformer.1} parent=1 // pred_fallthru
      _
    %v35 = vld [vmem:[%s0] sm:$0xf]
    %v36 = vld [vmem:[%s0 + $0x4] sm:$0xf]
    %v37 = vld [vmem:[%s0 + $0x8] sm:$0xf]
    %v38 = vld [vmem:[%s0 + $0xc] sm:$0xf]
    %v39 = vld [vmem:[%s0 + $0x10] sm:$0xf]
    %v40 = vld [vmem:[%s0 + $0x14] sm:$0xf]
    %v41 = vld [vmem:[%s0 + $0x18] sm:$0xf]
    %v42 = vld [vmem:[%s0 + $0x1c] sm:$0xf]
    %v43 = vld [vmem:[%s0 + $0x20] sm:$0xf]
    %v44 = vld [vmem:[%s0 + $0x24] sm:$0xf]
    %v45 = vld [vmem:[%s0 + $0x28] sm:$0xf]
    %v46 = vld [vmem:[%s0 + $0x2c] sm:$0xf]
    %v47 = vld [vmem:[%s0 + $0x30] sm:$0xf]
    %v48 = vld [vmem:[%s0 + $0x34] sm:$0xf]
    %v49 = vld [vmem:[%s0 + $0x38] sm:$0xf]
    %v50 = vld [vmem:[%s0 + $0x3c] sm:$0xf]
    %v51 = vld [vmem:[%s1] sm:$0xf]
    %v52 = vld [vmem:[%s1 + $0x4] sm:$0xf]
    %v53 = vld [vmem:[%s1 + $0x8] sm:$0xf]
    %v54 = vld [vmem:[%s1 + $0xc] sm:$0xf]
    %v55 = vld [vmem:[%s1 + $0x10] sm:$0xf]
    %v56 = vld [vmem:[%s1 + $0x14] sm:$0xf]
    %v57 = vld [vmem:[%s1 + $0x18] sm:$0xf]
    %v58 = vld [vmem:[%s1 + $0x1c] sm:$0xf]
    %v59 = vld [vmem:[%s1 + $0x20] sm:$0xf]
    %v60 = vld [vmem:[%s1 + $0x24] sm:$0xf]
    %v61 = vld [vmem:[%s1 + $0x28] sm:$0xf]
    %v62 = vld [vmem:[%s1 + $0x2c] sm:$0xf]
    %v63 = vld [vmem:[%s1 + $0x30] sm:$0xf]
    %v64 = vld [vmem:[%s1 + $0x34] sm:$0xf]
    %v65 = vld [vmem:[%s1 + $0x38] sm:$0xf]
    %v66 = vld [vmem:[%s1 + $0x3c] sm:$0xf]
    %v67 = vld [vmem:[%s2] sm:$0x1]
    %v69 = vlaneseq
    %v70 = vshrl.u32 %v69, 7
    %v71 = vsub.s32 0, %v70
    %v72 = vrot.slane %v67, %v71
    %v90 = vunpack.c.l.b16 %v35
    %v91 = vunpack.c.l.b16 %v36
    %v92 = vunpack.c.l.b16 %v37
    %v93 = vunpack.c.l.b16 %v38
    %v94 = vunpack.c.l.b16 %v39
    %v95 = vunpack.c.l.b16 %v40
    %v96 = vunpack.c.l.b16 %v41
    %v97 = vunpack.c.l.b16 %v42
    %v98 = vunpack.c.l.b16 %v43
    %v99 = vunpack.c.l.b16 %v44
    %v100 = vunpack.c.l.b16 %v45
    %v101 = vunpack.c.l.b16 %v46
    %v102 = vunpack.c.l.b16 %v47
    %v103 = vunpack.c.l.b16 %v48
    %v104 = vunpack.c.l.b16 %v49
    %v105 = vunpack.c.l.b16 %v50
    %v106 = vpack.c.b16 %v91, %v90
    %v107 = vpack.c.b16 %v93, %v92
    %v108 = vpack.c.b16 %v95, %v94
    %v109 = vpack.c.b16 %v97, %v96
    %v110 = vpack.c.b16 %v99, %v98
    %v111 = vpack.c.b16 %v101, %v100
    %v112 = vpack.c.b16 %v103, %v102
    %v113 = vpack.c.b16 %v105, %v104
    %v138 = vunpack.c.l.b16 %v51
    %v139 = vunpack.c.l.b16 %v52
    %v140 = vunpack.c.l.b16 %v53
    %v141 = vunpack.c.l.b16 %v54
    %v142 = vunpack.c.l.b16 %v55
    %v143 = vunpack.c.l.b16 %v56
    %v144 = vunpack.c.l.b16 %v57
    %v145 = vunpack.c.l.b16 %v58
    %v146 = vunpack.c.l.b16 %v59
    %v147 = vunpack.c.l.b16 %v60
    %v148 = vunpack.c.l.b16 %v61
    %v149 = vunpack.c.l.b16 %v62
    %v150 = vunpack.c.l.b16 %v63
    %v151 = vunpack.c.l.b16 %v64
    %v152 = vunpack.c.l.b16 %v65
    %v153 = vunpack.c.l.b16 %v66
    %v154 = vpack.c.b16 %v139, %v138
    %v155 = vpack.c.b16 %v141, %v140
    %v156 = vpack.c.b16 %v143, %v142
    %v157 = vpack.c.b16 %v145, %v144
    %v158 = vpack.c.b16 %v147, %v146
    %v159 = vpack.c.b16 %v149, %v148
    %v160 = vpack.c.b16 %v151, %v150
    %v161 = vpack.c.b16 %v153, %v152
    %170 = vmatprep.subr.bf16.mxu0 0
    %171 = vmatpush1.bf16.msra.mxu0 %v154
    %172 = vmatprep.subr.bf16.mxu0 0
    %173 = vmatpush1.bf16.msra.mxu0 %v155
    %174 = vmatprep.subr.bf16.mxu0 0
    %175 = vmatpush1.bf16.msra.mxu0 %v156
    %176 = vmatprep.subr.bf16.mxu0 0
    %177 = vmatpush1.bf16.msra.mxu0 %v157
    %178 = vmatprep.subr.bf16.mxu0 0
    %179 = vmatpush1.bf16.msra.mxu0 %v158
    %180 = vmatprep.subr.bf16.mxu0 0
    %181 = vmatpush1.bf16.msra.mxu0 %v159
    %182 = vmatprep.subr.bf16.mxu0 0
    %183 = vmatpush1.bf16.msra.mxu0 %v160
    %184 = vmatprep.subr.bf16.mxu0 0
    %185 = vmatpush1.bf16.msra.mxu0 %v161
    %186 = vmatprep.subr.bf16.mxu0 0
    %187 = vmatpush1.bf16.msra.mxu0 0
    %188 = vmatprep.subr.bf16.mxu0 0
    %189 = vmatpush1.bf16.msra.mxu0 0
    %190 = vmatprep.subr.bf16.mxu0 0
    %191 = vmatpush1.bf16.msra.mxu0 0
    %192 = vmatprep.subr.bf16.mxu0 0
    %193 = vmatpush1.bf16.msra.mxu0 0
    %194 = vmatprep.subr.bf16.mxu0 0
    %195 = vmatpush1.bf16.msra.mxu0 0
    %196 = vmatprep.subr.bf16.mxu0 0
    %197 = vmatpush1.bf16.msra.mxu0 0
    %198 = vmatprep.subr.bf16.mxu0 0
    %199 = vmatpush1.bf16.msra.mxu0 0
    %200 = vmatprep.subr.bf16.mxu0 0
    %201 = vmatpush1.bf16.msra.mxu0 0
    %202 = vmatprep.mubr.bf16.mxu0 0
    %203 = vmatmul.mubr.bf16.gmra.mrb[0].mxu0 %v106
    %v204 = vpop.f32.mrb[0].mxu0
    %v205 = vadd.f32 %v72, %v204
    %v206 = vpop.f32.mrb[0].mxu0
    %v207 = vpop.f32.mrb[0].mxu0
    %v208 = vadd.f32 %v72, %v207
    %v209 = vpop.f32.mrb[0].mxu0
    %210 = vmatprep.mubr.bf16.mxu0 0
    %211 = vmatmul.mubr.bf16.gmra.mrb[0].mxu0 %v107
    %v212 = vpop.f32.mrb[0].mxu0
    %v213 = vadd.f32 %v72, %v212
    %v214 = vpop.f32.mrb[0].mxu0
    %v215 = vpop.f32.mrb[0].mxu0
    %v216 = vadd.f32 %v72, %v215
    %v217 = vpop.f32.mrb[0].mxu0
    %218 = vmatprep.mubr.bf16.mxu0 0
    %219 = vmatmul.mubr.bf16.gmra.mrb[0].mxu0 %v108
    %v220 = vpop.f32.mrb[0].mxu0
    %v221 = vadd.f32 %v72, %v220
    %v222 = vpop.f32.mrb[0].mxu0
    %v223 = vpop.f32.mrb[0].mxu0
    %v224 = vadd.f32 %v72, %v223
    %v225 = vpop.f32.mrb[0].mxu0
    %226 = vmatprep.mubr.bf16.mxu0 0
    %227 = vmatmul.mubr.bf16.gmra.mrb[0].mxu0 %v109
    %v228 = vpop.f32.mrb[0].mxu0
    %v229 = vadd.f32 %v72, %v228
    %v230 = vpop.f32.mrb[0].mxu0
    %v231 = vpop.f32.mrb[0].mxu0
    %v232 = vadd.f32 %v72, %v231
    %v233 = vpop.f32.mrb[0].mxu0
    %234 = vmatprep.mubr.bf16.mxu0 0
    %235 = vmatmul.mubr.bf16.gmra.mrb[0].mxu0 %v110
    %v236 = vpop.f32.mrb[0].mxu0
    %v237 = vadd.f32 %v72, %v236
    %v238 = vpop.f32.mrb[0].mxu0
    %v239 = vpop.f32.mrb[0].mxu0
    %v240 = vadd.f32 %v72, %v239
    %v241 = vpop.f32.mrb[0].mxu0
    %242 = vmatprep.mubr.bf16.mxu0 0
    %243 = vmatmul.mubr.bf16.gmra.mrb[0].mxu0 %v111
    %v244 = vpop.f32.mrb[0].mxu0
    %v245 = vadd.f32 %v72, %v244
    %v246 = vpop.f32.mrb[0].mxu0
    %v247 = vpop.f32.mrb[0].mxu0
    %v248 = vadd.f32 %v72, %v247
    %v249 = vpop.f32.mrb[0].mxu0
    %250 = vmatprep.mubr.bf16.mxu0 0
    %251 = vmatmul.mubr.bf16.gmra.mrb[0].mxu0 %v112
    %v252 = vpop.f32.mrb[0].mxu0
    %v253 = vadd.f32 %v72, %v252
    %v254 = vpop.f32.mrb[0].mxu0
    %v255 = vpop.f32.mrb[0].mxu0
    %v256 = vadd.f32 %v72, %v255
    %v257 = vpop.f32.mrb[0].mxu0
    %258 = vmatprep.mubr.bf16.mxu0 0
    %259 = vmatmul.mubr.bf16.gmra.mrb[0].mxu0 %v113
    %v260 = vpop.f32.mrb[0].mxu0
    %v261 = vadd.f32 %v72, %v260
    %v262 = vpop.f32.mrb[0].mxu0
    %v263 = vpop.f32.mrb[0].mxu0
    %v264 = vadd.f32 %v72, %v263
    %v265 = vpop.f32.mrb[0].mxu0
    %266 = vdwg.mxu0
    %v267 = vmax.f32 %v205, 0.0
    %v268 = vmax.f32 %v208, 0.0
    %v269 = vmax.f32 %v213, 0.0
    %v270 = vmax.f32 %v216, 0.0
    %v271 = vmax.f32 %v221, 0.0
    %v272 = vmax.f32 %v224, 0.0
    %v273 = vmax.f32 %v229, 0.0
    %v274 = vmax.f32 %v232, 0.0
    %v275 = vmax.f32 %v237, 0.0
    %v276 = vmax.f32 %v240, 0.0
    %v277 = vmax.f32 %v245, 0.0
    %v278 = vmax.f32 %v248, 0.0
    %v279 = vmax.f32 %v253, 0.0
    %v280 = vmax.f32 %v256, 0.0
    %v281 = vmax.f32 %v261, 0.0
    %v282 = vmax.f32 %v264, 0.0
    %v283 = vpack.c.bf16 %v268, %v267
    %v284 = vpack.c.bf16 %v270, %v269
    %v285 = vpack.c.bf16 %v272, %v271
    %v286 = vpack.c.bf16 %v274, %v273
    %v287 = vpack.c.bf16 %v276, %v275
    %v288 = vpack.c.bf16 %v278, %v277
    %v289 = vpack.c.bf16 %v280, %v279
    %v290 = vpack.c.bf16 %v282, %v281
    %v291 = vld [vmem:[#allocation2] sm:$0xf]
    %v292 = vld [vmem:[#allocation2 + $0x4] sm:$0xf]
    %v293 = vld [vmem:[#allocation2 + $0x8] sm:$0xf]
    %v294 = vld [vmem:[#allocation2 + $0xc] sm:$0xf]
    %v295 = vld [vmem:[#allocation2 + $0x10] sm:$0xf]
    %v296 = vld [vmem:[#allocation2 + $0x14] sm:$0xf]
    %v297 = vld [vmem:[#allocation2 + $0x18] sm:$0xf]
    %v298 = vld [vmem:[#allocation2 + $0x1c] sm:$0xf]
    %v299 = vld [vmem:[#allocation2 + $0x20] sm:$0xf]
    %v300 = vld [vmem:[#allocation2 + $0x24] sm:$0xf]
    %v301 = vld [vmem:[#allocation2 + $0x28] sm:$0xf]
    %v302 = vld [vmem:[#allocation2 + $0x2c] sm:$0xf]
    %v303 = vld [vmem:[#allocation2 + $0x30] sm:$0xf]
    %v304 = vld [vmem:[#allocation2 + $0x34] sm:$0xf]
    %v305 = vld [vmem:[#allocation2 + $0x38] sm:$0xf]
    %v306 = vld [vmem:[#allocation2 + $0x3c] sm:$0xf]
    %v307 = vld [vmem:[%s4] sm:$0x1]
    %v309 = vlaneseq
    %v310 = vshrl.u32 %v309, 7
    %v311 = vsub.s32 0, %v310
    %v312 = vrot.slane %v307, %v311
    %v330 = vunpack.c.l.b16 %v291
    %v331 = vunpack.c.l.b16 %v292
    %v332 = vunpack.c.l.b16 %v293
    %v333 = vunpack.c.l.b16 %v294
    %v334 = vunpack.c.l.b16 %v295
    %v335 = vunpack.c.l.b16 %v296
    %v336 = vunpack.c.l.b16 %v297
    %v337 = vunpack.c.l.b16 %v298
    %v338 = vunpack.c.l.b16 %v299
    %v339 = vunpack.c.l.b16 %v300
    %v340 = vunpack.c.l.b16 %v301
    %v341 = vunpack.c.l.b16 %v302
    %v342 = vunpack.c.l.b16 %v303
    %v343 = vunpack.c.l.b16 %v304
    %v344 = vunpack.c.l.b16 %v305
    %v345 = vunpack.c.l.b16 %v306
    %v346 = vpack.c.b16 %v331, %v330
    %v347 = vpack.c.b16 %v333, %v332
    %v348 = vpack.c.b16 %v335, %v334
    %v349 = vpack.c.b16 %v337, %v336
    %v350 = vpack.c.b16 %v339, %v338
    %v351 = vpack.c.b16 %v341, %v340
    %v352 = vpack.c.b16 %v343, %v342
    %v353 = vpack.c.b16 %v345, %v344
    %362 = vmatprep.subr.bf16.mxu0 0
    %363 = vmatpush1.bf16.msra.mxu0 %v346
    %364 = vmatprep.subr.bf16.mxu0 0
    %365 = vmatpush1.bf16.msra.mxu0 %v347
    %366 = vmatprep.subr.bf16.mxu0 0
    %367 = vmatpush1.bf16.msra.mxu0 %v348
    %368 = vmatprep.subr.bf16.mxu0 0
    %369 = vmatpush1.bf16.msra.mxu0 %v349
    %370 = vmatprep.subr.bf16.mxu0 0
    %371 = vmatpush1.bf16.msra.mxu0 %v350
    %372 = vmatprep.subr.bf16.mxu0 0
    %373 = vmatpush1.bf16.msra.mxu0 %v351
    %374 = vmatprep.subr.bf16.mxu0 0
    %375 = vmatpush1.bf16.msra.mxu0 %v352
    %376 = vmatprep.subr.bf16.mxu0 0
    %377 = vmatpush1.bf16.msra.mxu0 %v353
    %378 = vmatprep.subr.bf16.mxu0 0
    %379 = vmatpush1.bf16.msra.mxu0 0
    %380 = vmatprep.subr.bf16.mxu0 0
    %381 = vmatpush1.bf16.msra.mxu0 0
    %382 = vmatprep.subr.bf16.mxu0 0
    %383 = vmatpush1.bf16.msra.mxu0 0
    %384 = vmatprep.subr.bf16.mxu0 0
    %385 = vmatpush1.bf16.msra.mxu0 0
    %386 = vmatprep.subr.bf16.mxu0 0
    %387 = vmatpush1.bf16.msra.mxu0 0
    %388 = vmatprep.subr.bf16.mxu0 0
    %389 = vmatpush1.bf16.msra.mxu0 0
    %390 = vmatprep.subr.bf16.mxu0 0
    %391 = vmatpush1.bf16.msra.mxu0 0
    %392 = vmatprep.subr.bf16.mxu0 0
    %393 = vmatpush1.bf16.msra.mxu0 0
    %394 = vmatprep.mubr.bf16.mxu0 0
    %395 = vmatmul.mubr.bf16.gmra.mrb[0].mxu0 %v283
    %v396 = vpop.f32.mrb[0].mxu0
    %v397 = vadd.f32 %v312, %v396
    %v398 = vpop.f32.mrb[0].mxu0
    %v399 = vpop.f32.mrb[0].mxu0
    %v400 = vadd.f32 %v312, %v399
    %v401 = vpop.f32.mrb[0].mxu0
    %402 = vmatprep.mubr.bf16.mxu0 0
    %403 = vmatmul.mubr.bf16.gmra.mrb[0].mxu0 %v284
    %v404 = vpop.f32.mrb[0].mxu0
    %v405 = vadd.f32 %v312, %v404
    %v406 = vpop.f32.mrb[0].mxu0
    %v407 = vpop.f32.mrb[0].mxu0
    %v408 = vadd.f32 %v312, %v407
    %v409 = vpop.f32.mrb[0].mxu0
    %410 = vmatprep.mubr.bf16.mxu0 0
    %411 = vmatmul.mubr.bf16.gmra.mrb[0].mxu0 %v285
    %v412 = vpop.f32.mrb[0].mxu0
    %v413 = vadd.f32 %v312, %v412
    %v414 = vpop.f32.mrb[0].mxu0
    %v415 = vpop.f32.mrb[0].mxu0
    %v416 = vadd.f32 %v312, %v415
    %v417 = vpop.f32.mrb[0].mxu0
    %418 = vmatprep.mubr.bf16.mxu0 0
    %419 = vmatmul.mubr.bf16.gmra.mrb[0].mxu0 %v286
    %v420 = vpop.f32.mrb[0].mxu0
    %v421 = vadd.f32 %v312, %v420
    %v422 = vpop.f32.mrb[0].mxu0
    %v423 = vpop.f32.mrb[0].mxu0
    %v424 = vadd.f32 %v312, %v423
    %v425 = vpop.f32.mrb[0].mxu0
    %426 = vmatprep.mubr.bf16.mxu0 0
    %427 = vmatmul.mubr.bf16.gmra.mrb[0].mxu0 %v287
    %v428 = vpop.f32.mrb[0].mxu0
    %v429 = vadd.f32 %v312, %v428
    %v430 = vpop.f32.mrb[0].mxu0
    %v431 = vpop.f32.mrb[0].mxu0
    %v432 = vadd.f32 %v312, %v431
    %v433 = vpop.f32.mrb[0].mxu0
    %434 = vmatprep.mubr.bf16.mxu0 0
    %435 = vmatmul.mubr.bf16.gmra.mrb[0].mxu0 %v288
    %v436 = vpop.f32.mrb[0].mxu0
    %v437 = vadd.f32 %v312, %v436
    %v438 = vpop.f32.mrb[0].mxu0
    %v439 = vpop.f32.mrb[0].mxu0
    %v440 = vadd.f32 %v312, %v439
    %v441 = vpop.f32.mrb[0].mxu0
    %442 = vmatprep.mubr.bf16.mxu0 0
    %443 = vmatmul.mubr.bf16.gmra.mrb[0].mxu0 %v289
    %v444 = vpop.f32.mrb[0].mxu0
    %v445 = vadd.f32 %v312, %v444
    %v446 = vpop.f32.mrb[0].mxu0
    %v447 = vpop.f32.mrb[0].mxu0
    %v448 = vadd.f32 %v312, %v447
    %v449 = vpop.f32.mrb[0].mxu0
    %450 = vmatprep.mubr.bf16.mxu0 0
    %451 = vmatmul.mubr.bf16.gmra.mrb[0].mxu0 %v290
    %v452 = vpop.f32.mrb[0].mxu0
    %v453 = vadd.f32 %v312, %v452
    %v454 = vpop.f32.mrb[0].mxu0
    %v455 = vpop.f32.mrb[0].mxu0
    %v456 = vadd.f32 %v312, %v455
    %v457 = vpop.f32.mrb[0].mxu0
    %458 = vdwg.mxu0
    %459 = vst [vmem:[%s5] sm:$0xff] %v397
    %460 = vst [vmem:[%s5 + $0x8] sm:$0xff] %v400
    %461 = vst [vmem:[%s5 + $0x10] sm:$0xff] %v405
    %462 = vst [vmem:[%s5 + $0x18] sm:$0xff] %v408
    %463 = vst [vmem:[%s5 + $0x20] sm:$0xff] %v413
    %464 = vst [vmem:[%s5 + $0x28] sm:$0xff] %v416
    %465 = vst [vmem:[%s5 + $0x30] sm:$0xff] %v421
    %466 = vst [vmem:[%s5 + $0x38] sm:$0xff] %v424
    %467 = vst [vmem:[%s5 + $0x40] sm:$0xff] %v429
    %468 = vst [vmem:[%s5 + $0x48] sm:$0xff] %v432
    %469 = vst [vmem:[%s5 + $0x50] sm:$0xff] %v437
    %470 = vst [vmem:[%s5 + $0x58] sm:$0xff] %v440
    %471 = vst [vmem:[%s5 + $0x60] sm:$0xff] %v445
    %472 = vst [vmem:[%s5 + $0x68] sm:$0xff] %v448
    %473 = vst [vmem:[%s5 + $0x70] sm:$0xff] %v453
    %474 = vst [vmem:[%s5 + $0x78] sm:$0xff] %v456
    // Predicated region
    $region26: #{mlp_transformer.1} parent=1 // pred_check
      _
    $region27: #{mlp_transformer.1} parent=1 // pred_check_branch
      %476 = sbr.rel (0) target = $region29
    $region28: #{mlp_transformer.1} parent=1 // pred_region
      _
    $region29: #{mlp_transformer.1} parent=1 // pred_fallthru
      _
    // Predicated region
    $region30: #{mlp_transformer.1} parent=1 // pred_check
      _
    $region31: #{mlp_transformer.1} parent=1 // pred_check_branch
      %478 = sbr.rel (0) target = $region33
    $region32: #{mlp_transformer.1} parent=1 // pred_region
      _
    $region33: #{mlp_transformer.1} parent=1 // pred_fallthru
      _
    %479 = vsyncpa [#allocation3], 1

</llo_original>
